<compile_context>
chip_gen: v6e
topology: v6e:2x2x1
jax: 0.10.0
libtpu: 0.0.40
codegen_flags: <defaults>
</compile_context>

<pallas_src>
import functools
from collections import namedtuple

import jax
import jax.numpy as jnp
from jax.experimental import pallas as pl
from jax.experimental.pallas import tpu as pltpu


# Unrolled (static) strip loop only for very short trip counts; longer strip
# loops use pl.loop so accumulator live ranges stay bounded.
_STATIC_STRIP_LIMIT = 2


def _psf_conv_kernel(w_ref, x_ref, o_ref, xp_ref, *, K, pad, row_blk, h_reflect):
    """Depthwise PSF cross-correlation over one (rows, W, Ct) block.

    w_ref : (K*K,) float32 PSF taps in SMEM (scalar path).
    x_ref : (H_out, W, Ct) block if h_reflect else (H_out + 2*pad, W, Ct)
            (rows already carry their halo / H-reflection context).
    o_ref : (H_out, W, Ct) output block (channels-last; lanes = Ct).
    xp_ref: (H_out + 2*pad, W + 2*pad, Ct) VMEM scratch (reflection-padded).
    """
    H_out, W, Ct = o_ref.shape

    # ---- fused reflection padding into the VMEM scratch ----
    if h_reflect:
        xp_ref[pad:pad + H_out, pad:pad + W, :] = x_ref[...]
        for i in range(pad):  # top / bottom rows (reflect, edge excluded)
            xp_ref[pad - 1 - i:pad - i, pad:pad + W, :] = x_ref[i + 1:i + 2, :, :]
            xp_ref[pad + H_out + i:pad + H_out + i + 1, pad:pad + W, :] = (
                x_ref[H_out - 2 - i:H_out - 1 - i, :, :])
    else:
        xp_ref[:, pad:pad + W, :] = x_ref[...]
    # Left / right columns over the full row extent (corners get the correct
    # double reflection because the rows above are already in place).
    for j in range(pad):
        xp_ref[:, pad - 1 - j:pad - j, :] = xp_ref[:, pad + 1 + j:pad + 2 + j, :]
        xp_ref[:, pad + W + j:pad + W + j + 1, :] = (
            xp_ref[:, pad + W - 2 - j:pad + W - 1 - j, :])

    # ---- strip-mined K*K tap accumulation (f32, VPU) ----
    # Per output-row strip the accumulator stays in a handful of vregs, and the
    # sublane-shifted slab xs is materialized once per dj (K relayouts per
    # strip, not K*K); the inner di slice is a free leading-axis selection.
    # TODO(synk): MXU (banded-Toeplitz matmul) path for large K where the VPU
    # tap loop dominates.
    def compute_rows(r0, nrows):
        acc = jnp.zeros((nrows, W, Ct), jnp.float32)
        for dj in range(K):
            xs = xp_ref[pl.ds(r0, nrows + 2 * pad), dj:dj + W, :].astype(jnp.float32)
            for di in range(K):
                acc = acc + xs[di:di + nrows, :, :] * w_ref[di * K + dj]
        o_ref[pl.ds(r0, nrows), :, :] = acc.astype(o_ref.dtype)

    n_full = H_out // row_blk
    rem = H_out - n_full * row_blk
    if n_full <= _STATIC_STRIP_LIMIT:
        for s in range(n_full):
            compute_rows(s * row_blk, row_blk)
    else:
        @pl.loop(0, n_full)
        def _(s):
            compute_rows(pl.multiple_of(s * row_blk, row_blk), row_blk)
    if rem:
        compute_rows(n_full * row_blk, rem)


def _round_up(a, b):
    return -(-a // b) * b


def _tpu_caps():
    """(per-core VMEM bytes, TensorCores per chip) with conservative fallbacks."""
    vmem_cap, n_cores = 64 * 1024 * 1024, 0
    try:
        info = pltpu.get_tpu_info()
        vmem_cap = int(getattr(info, "vmem_capacity_bytes", vmem_cap))
        n_cores = int(getattr(info, "num_cores", 0) or 0)
    except Exception:
        pass
    if n_cores <= 0:
        # 64 MiB / core is the v7x signature (2 TensorCores per chip);
        # v5e / v6e have 128 MiB and a single TensorCore.
        n_cores = 2 if vmem_cap <= 64 * 1024 * 1024 else 1
    return vmem_cap, n_cores


def _is_v5e():
    try:
        kind = jax.devices()[0].device_kind.lower()
        return ("v5 lite" in kind) or ("v5e" in kind) or ("v5litepod" in kind)
    except Exception:
        return False


def _est_vmem(h_out, Ct, W, pad, itemsize, halo, in_bufs=2):
    """Per-grid-step VMEM bytes, including sublane / lane padding."""
    h_in = h_out + (2 * pad if halo else 0)
    w_s = _round_up(W, 8)
    wp_s = _round_up(W + 2 * pad, 8)
    c_l = _round_up(Ct, 128)
    in_b = in_bufs * h_in * w_s * c_l * itemsize
    out_b = 2 * h_out * w_s * c_l * itemsize
    scr_b = (h_out + 2 * pad) * wp_s * c_l * itemsize
    return in_b + out_b + scr_b


_Plan = namedtuple("_Plan", "Ct nC NCp halo Hblk num_h row_blk in_bufs est_bytes")


def _plan(H, W, pad, NC, itemsize, vmem_cap, n_cores, force_hblk=None):
    budget = (vmem_cap * 3) // 4  # ~48 MiB on v7x, ~96 MiB on v5e/v6e

    # ---- lane (channel) tile: multiple of 128 whenever possible ----
    if NC <= 128:
        # TODO(synk): for tiny N*C (< 128 lanes) fold W into the lane dim to
        # avoid masked stores; the nominal (2, 4, 16, 16) shapes run lane-masked.
        Ct, nC, NCp = NC, 1, NC
    else:
        Ct = min(512, _round_up(NC, 128))
        while Ct > 128 and _est_vmem(H, Ct, W, pad, itemsize, False) > budget:
            Ct -= 128
        nC = -(-NC // Ct)
        Ct = _round_up(-(-NC // nC), 128)
        NCp = nC * Ct

    # ---- H extent: whole image if it fits, else halo-tiled row strips ----
    halo = (force_hblk is not None or
            _est_vmem(H, Ct, W, pad, itemsize, False) > budget)
    if halo:
        if force_hblk is not None:
            Hblk = max(1, min(int(force_hblk), H))
        else:
            Hblk = _round_up(H, 8)
            while Hblk > 8 and _est_vmem(Hblk, Ct, W, pad, itemsize, True) > budget:
                Hblk -= 8
            # TODO(synk): add W tiling for images where even an 8-row,
            # 128-lane strip overflows the VMEM budget.
        num_h = -(-H // Hblk)
    else:
        Hblk, num_h = H, 1

    # ---- v7x: make sure both TensorCores get a parallel grid step ----
    if (force_hblk is None and n_cores >= 2 and num_h * nC == 1
            and H * W * NCp >= 32768):
        if NC >= 256:
            nC = 2
            Ct = _round_up(-(-NC // 2), 128)
            NCp = nC * Ct
        elif H >= 16:
            halo = True
            Hblk = _round_up(-(-H // 2), 8)
            num_h = -(-H // Hblk)

    # ---- output-row strip size: keep the f32 accumulator ~<= 8 vregs ----
    vregs_per_row = (-(-W // 8)) * (-(-Ct // 128))
    row_blk = max(1, min(Hblk, 8 // max(1, vregs_per_row)))

    # ---- v5e, memory-bound regime (K <= 3): deeper input buffering ----
    in_bufs = 2
    if (pad <= 1 and num_h * nC >= 3 and _is_v5e()
            and _est_vmem(Hblk, Ct, W, pad, itemsize, halo, 3) <= budget):
        in_bufs = 3

    est = _est_vmem(Hblk, Ct, W, pad, itemsize, halo, in_bufs)
    return _Plan(Ct, nC, NCp, halo, Hblk, num_h, row_blk, in_bufs, est)


def psf_convolution_2d(x, kernel_psf, *, h_block_rows=None):
    """x: (N, C, H, W), kernel_psf: (K, K) -> (N, C, H, W).

    Matches ReflectionPad2d((K-1)//2) + depthwise Conv2d(K, groups=C, w=PSF).
    `h_block_rows` optionally forces halo-tiled H strips of that many rows
    (used to exercise the large-image path on small inputs).
    """
    N, C, H, W = x.shape
    K = int(kernel_psf.shape[0])
    if K % 2 != 1:
        raise ValueError("PSF kernel size must be odd (module's padding math).")
    pad = (K - 1) // 2
    if pad > H - 1 or pad > W - 1:
        raise ValueError("Reflection padding needs pad <= H-1 and pad <= W-1.")
    NC = N * C
    itemsize = x.dtype.itemsize

    vmem_cap, n_cores = _tpu_caps()
    p = _plan(H, W, pad, NC, itemsize, vmem_cap, n_cores, force_hblk=h_block_rows)

    # Channels-last: (N, C, H, W) -> (H, W, N*C); N*C sits in the lane dim so
    # stores are lane-dense and the tap shifts live in leading/sublane dims.
    x_cl = jnp.transpose(x, (2, 3, 0, 1)).reshape(H, W, NC)
    if p.NCp != NC:
        x_cl = jnp.pad(x_cl, ((0, 0), (0, 0), (0, p.NCp - NC)))

    if p.halo:
        # Large-image path: H-reflection once in the wrapper, then overlapping
        # row strips (pad-row halo) so each grid step fits in VMEM.
        # TODO(synk): replace the strip-stacking copy with a manual halo DMA
        # (memory_space=pl.ANY + make_async_copy) to avoid the extra HBM pass.
        x_hp = jnp.pad(x_cl, ((pad, pad), (0, 0), (0, 0)), mode="reflect")
        rows_needed = p.num_h * p.Hblk + 2 * pad
        if rows_needed > H + 2 * pad:
            x_hp = jnp.pad(x_hp, ((0, rows_needed - (H + 2 * pad)), (0, 0), (0, 0)))
        x_in = jnp.stack([x_hp[h * p.Hblk:h * p.Hblk + p.Hblk + 2 * pad]
                          for h in range(p.num_h)], axis=0)
        h_in = p.Hblk + 2 * pad
    else:
        x_in = x_cl[None]
        h_in = H

    kernel = functools.partial(_psf_conv_kernel, K=K, pad=pad,
                               row_blk=p.row_blk, h_reflect=not p.halo)

    x_index = lambda h, c: (h, 0, 0, c)
    x_block = (None, h_in, W, p.Ct)
    if p.in_bufs > 2:
        try:
            x_spec = pl.BlockSpec(x_block, x_index,
                                  pipeline_mode=pl.Buffered(p.in_bufs))
        except TypeError:  # BlockSpec without pipeline_mode support
            x_spec = pl.BlockSpec(x_block, x_index)
    else:
        x_spec = pl.BlockSpec(x_block, x_index)

    vmem_limit = int(min(vmem_cap, max(32 * 1024 * 1024, p.est_bytes + (8 << 20))))
    cost = pl.CostEstimate(
        flops=2 * K * K * p.num_h * p.Hblk * W * p.NCp,
        bytes_accessed=(p.num_h * (h_in + p.Hblk) * W * p.NCp) * itemsize,
        transcendentals=0)

    out = pl.pallas_call(
        kernel,
        out_shape=jax.ShapeDtypeStruct((p.num_h, p.Hblk, W, p.NCp), x.dtype),
        grid=(p.num_h, p.nC),
        in_specs=[
            # PSF taps: tiny f32 scalar table -> SMEM (32-bit scalar path).
            pl.BlockSpec(memory_space=pltpu.MemorySpace.SMEM),
            x_spec,
        ],
        out_specs=pl.BlockSpec((None, p.Hblk, W, p.Ct), lambda h, c: (h, 0, 0, c)),
        scratch_shapes=[pltpu.VMEM((p.Hblk + 2 * pad, W + 2 * pad, p.Ct), x.dtype)],
        compiler_params=pltpu.CompilerParams(
            dimension_semantics=("parallel", "parallel"),
            vmem_limit_bytes=vmem_limit),
        cost_estimate=cost,
    )(jnp.asarray(kernel_psf, jnp.float32).reshape(-1), x_in)

    out = out.reshape(p.num_h * p.Hblk, W, p.NCp)[:H, :, :NC].reshape(H, W, N, C)
    return jnp.transpose(out, (2, 3, 0, 1))


def _reference(x, kernel_psf):
    """Pure-JAX f32 reference: reflection pad + depthwise cross-correlation."""
    N, C, H, W = x.shape
    K = kernel_psf.shape[0]
    pad = (K - 1) // 2
    x = x.astype(jnp.float32)
    xp = jnp.pad(x, ((0, 0), (0, 0), (pad, pad), (pad, pad)), mode="reflect")
    out = jnp.zeros(x.shape, jnp.float32)
    for di in range(K):
        for dj in range(K):
            out = out + xp[:, :, di:di + H, dj:dj + W] * kernel_psf[di, dj]
    return out


if __name__ == "__main__":
    root = jax.random.PRNGKey(0)
    keys = jax.random.split(root, 5)

    def run_case(tag, case_key, N, C, H, W, K, dtype=jnp.float32,
                 h_block_rows=None, tol=1e-5):
        kx, kp = jax.random.split(case_key)
        x = jax.random.normal(kx, (N, C, H, W), dtype=jnp.float32)
        psf = jax.random.uniform(kp, (K, K), dtype=jnp.float32) + 0.1
        psf = psf / jnp.sum(psf)
        x = x.astype(dtype)
        out = jax.block_until_ready(
            psf_convolution_2d(x, psf, h_block_rows=h_block_rows))
        ref = _reference(x, psf)
        assert out.shape == (N, C, H, W)
        err = float(jnp.max(jnp.abs(out.astype(jnp.float32) - ref)))
        assert err <= tol, f"{tag}: max abs error {err} > {tol}"

    # 1) Module's nominal small shapes (single block, fused H+W reflection).
    run_case("nominal", keys[0], 2, 4, 16, 16, 5)
    # 2) Lane-dense path (N*C = 256), K = 3.
    run_case("lane_dense", keys[1], 2, 128, 16, 16, 3)
    # 3) Forced halo-tiled H strips (large-image path) + dynamic strip loop.
    run_case("h_strips", keys[2], 1, 8, 40, 16, 5, h_block_rows=24)
    # 4) H not a multiple of the row strip (tail-strip path).
    run_case("tail_strip", keys[3], 2, 4, 18, 16, 3)
    # 5) bf16 activations with f32 taps / f32 accumulation.
    run_case("bf16", keys[4], 2, 4, 16, 16, 5, dtype=jnp.bfloat16, tol=3e-2)

    print("KERNEL_OK")
</pallas_src>

<mosaic_0001>
module attributes {stable_mosaic.version = 11 : i64} {
  func.func @_psf_conv_kernel(%arg0: i32, %arg1: i32, %arg2: memref<25xf32, #tpu.memory_space<smem>>, %arg3: memref<1x16x16x8xf32, #tpu.memory_space<vmem>>, %arg4: memref<1x16x16x8xf32, #tpu.memory_space<vmem>>, %arg5: memref<20x20x8xf32, #tpu.memory_space<vmem>>) attributes {dimension_semantics = [#tpu.dimension_semantics<parallel>, #tpu.dimension_semantics<parallel>], iteration_bounds = array<i64: 1, 1>, scalar_prefetch = 0 : i64, scratch_operands = 1 : i64, tpu.core_type = #tpu.core_type<tc>, window_params = [{transform_indices = @transform_0, window_bounds = array<i64: 25>}, {transform_indices = @transform_1, window_bounds = array<i64: 1, 16, 16, 8>}, {transform_indices = @transform_2, window_bounds = array<i64: 1, 16, 16, 8>}]} {
    %c0 = arith.constant 0 : index
    %c0_0 = arith.constant 0 : index
    %c0_1 = arith.constant 0 : index
    %c0_2 = arith.constant 0 : index
    %0 = vector.load %arg3[%c0, %c0_0, %c0_1, %c0_2] : memref<1x16x16x8xf32, #tpu.memory_space<vmem>>, vector<1x16x16x8xf32>
    %1 = vector.shape_cast %0 : vector<1x16x16x8xf32> to vector<16x16x8xf32>
    %c2 = arith.constant 2 : index
    %c2_3 = arith.constant 2 : index
    %c0_4 = arith.constant 0 : index
    %2 = vector.load %arg5[%c2, %c2_3, %c0_4] : memref<20x20x8xf32, #tpu.memory_space<vmem>>, vector<16x16x8xf32>
    tpu.vector_store %arg5[%c2, %c2_3, %c0_4], %1 {strides = array<i32>} : memref<20x20x8xf32, #tpu.memory_space<vmem>>, vector<16x16x8xf32>,
    %c0_5 = arith.constant 0 : index
    %c1 = arith.constant 1 : index
    %c0_6 = arith.constant 0 : index
    %c0_7 = arith.constant 0 : index
    %3 = vector.load %arg3[%c0_5, %c1, %c0_6, %c0_7] : memref<1x16x16x8xf32, #tpu.memory_space<vmem>>, vector<1x1x16x8xf32>
    %4 = vector.shape_cast %3 : vector<1x1x16x8xf32> to vector<1x16x8xf32>
    %c1_8 = arith.constant 1 : index
    %c2_9 = arith.constant 2 : index
    %c0_10 = arith.constant 0 : index
    %5 = vector.load %arg5[%c1_8, %c2_9, %c0_10] : memref<20x20x8xf32, #tpu.memory_space<vmem>>, vector<1x16x8xf32>
    tpu.vector_store %arg5[%c1_8, %c2_9, %c0_10], %4 {strides = array<i32>} : memref<20x20x8xf32, #tpu.memory_space<vmem>>, vector<1x16x8xf32>,
    %c0_11 = arith.constant 0 : index
    %c14 = arith.constant 14 : index
    %c0_12 = arith.constant 0 : index
    %c0_13 = arith.constant 0 : index
    %6 = vector.load %arg3[%c0_11, %c14, %c0_12, %c0_13] : memref<1x16x16x8xf32, #tpu.memory_space<vmem>>, vector<1x1x16x8xf32>
    %7 = vector.shape_cast %6 : vector<1x1x16x8xf32> to vector<1x16x8xf32>
    %c18 = arith.constant 18 : index
    %c2_14 = arith.constant 2 : index
    %c0_15 = arith.constant 0 : index
    %8 = vector.load %arg5[%c18, %c2_14, %c0_15] : memref<20x20x8xf32, #tpu.memory_space<vmem>>, vector<1x16x8xf32>
    tpu.vector_store %arg5[%c18, %c2_14, %c0_15], %7 {strides = array<i32>} : memref<20x20x8xf32, #tpu.memory_space<vmem>>, vector<1x16x8xf32>,
    %c0_16 = arith.constant 0 : index
    %c2_17 = arith.constant 2 : index
    %c0_18 = arith.constant 0 : index
    %c0_19 = arith.constant 0 : index
    %9 = vector.load %arg3[%c0_16, %c2_17, %c0_18, %c0_19] : memref<1x16x16x8xf32, #tpu.memory_space<vmem>>, vector<1x1x16x8xf32>
    %10 = vector.shape_cast %9 : vector<1x1x16x8xf32> to vector<1x16x8xf32>
    %c0_20 = arith.constant 0 : index
    %c2_21 = arith.constant 2 : index
    %c0_22 = arith.constant 0 : index
    %11 = vector.load %arg5[%c0_20, %c2_21, %c0_22] : memref<20x20x8xf32, #tpu.memory_space<vmem>>, vector<1x16x8xf32>
    tpu.vector_store %arg5[%c0_20, %c2_21, %c0_22], %10 {strides = array<i32>} : memref<20x20x8xf32, #tpu.memory_space<vmem>>, vector<1x16x8xf32>,
    %c0_23 = arith.constant 0 : index
    %c13 = arith.constant 13 : index
    %c0_24 = arith.constant 0 : index
    %c0_25 = arith.constant 0 : index
    %12 = vector.load %arg3[%c0_23, %c13, %c0_24, %c0_25] : memref<1x16x16x8xf32, #tpu.memory_space<vmem>>, vector<1x1x16x8xf32>
    %13 = vector.shape_cast %12 : vector<1x1x16x8xf32> to vector<1x16x8xf32>
    %c19 = arith.constant 19 : index
    %c2_26 = arith.constant 2 : index
    %c0_27 = arith.constant 0 : index
    %14 = vector.load %arg5[%c19, %c2_26, %c0_27] : memref<20x20x8xf32, #tpu.memory_space<vmem>>, vector<1x16x8xf32>
    tpu.vector_store %arg5[%c19, %c2_26, %c0_27], %13 {strides = array<i32>} : memref<20x20x8xf32, #tpu.memory_space<vmem>>, vector<1x16x8xf32>,
    %c0_28 = arith.constant 0 : index
    %c3 = arith.constant 3 : index
    %c0_29 = arith.constant 0 : index
    %15 = vector.load %arg5[%c0_28, %c3, %c0_29] : memref<20x20x8xf32, #tpu.memory_space<vmem>>, vector<20x1x8xf32>
    %c0_30 = arith.constant 0 : index
    %c1_31 = arith.constant 1 : index
    %c0_32 = arith.constant 0 : index
    %16 = vector.load %arg5[%c0_30, %c1_31, %c0_32] : memref<20x20x8xf32, #tpu.memory_space<vmem>>, vector<20x1x8xf32>
    tpu.vector_store %arg5[%c0_30, %c1_31, %c0_32], %15 {strides = array<i32>} : memref<20x20x8xf32, #tpu.memory_space<vmem>>, vector<20x1x8xf32>,
    %c0_33 = arith.constant 0 : index
    %c16 = arith.constant 16 : index
    %c0_34 = arith.constant 0 : index
    %17 = vector.load %arg5[%c0_33, %c16, %c0_34] : memref<20x20x8xf32, #tpu.memory_space<vmem>>, vector<20x1x8xf32>
    %c0_35 = arith.constant 0 : index
    %c18_36 = arith.constant 18 : index
    %c0_37 = arith.constant 0 : index
    %18 = vector.load %arg5[%c0_35, %c18_36, %c0_37] : memref<20x20x8xf32, #tpu.memory_space<vmem>>, vector<20x1x8xf32>
    tpu.vector_store %arg5[%c0_35, %c18_36, %c0_37], %17 {strides = array<i32>} : memref<20x20x8xf32, #tpu.memory_space<vmem>>, vector<20x1x8xf32>,
    %c0_38 = arith.constant 0 : index
    %c4 = arith.constant 4 : index
    %c0_39 = arith.constant 0 : index
    %19 = vector.load %arg5[%c0_38, %c4, %c0_39] : memref<20x20x8xf32, #tpu.memory_space<vmem>>, vector<20x1x8xf32>
    %c0_40 = arith.constant 0 : index
    %c0_41 = arith.constant 0 : index
    %c0_42 = arith.constant 0 : index
    %20 = vector.load %arg5[%c0_40, %c0_41, %c0_42] : memref<20x20x8xf32, #tpu.memory_space<vmem>>, vector<20x1x8xf32>
    tpu.vector_store %arg5[%c0_40, %c0_41, %c0_42], %19 {strides = array<i32>} : memref<20x20x8xf32, #tpu.memory_space<vmem>>, vector<20x1x8xf32>,
    %c0_43 = arith.constant 0 : index
    %c15 = arith.constant 15 : index
    %c0_44 = arith.constant 0 : index
    %21 = vector.load %arg5[%c0_43, %c15, %c0_44] : memref<20x20x8xf32, #tpu.memory_space<vmem>>, vector<20x1x8xf32>
    %c0_45 = arith.constant 0 : index
    %c19_46 = arith.constant 19 : index
    %c0_47 = arith.constant 0 : index
    %22 = vector.load %arg5[%c0_45, %c19_46, %c0_47] : memref<20x20x8xf32, #tpu.memory_space<vmem>>, vector<20x1x8xf32>
    tpu.vector_store %arg5[%c0_45, %c19_46, %c0_47], %21 {strides = array<i32>} : memref<20x20x8xf32, #tpu.memory_space<vmem>>, vector<20x1x8xf32>,
    %c0_i32 = arith.constant 0 : i32
    %c4_i32 = arith.constant 4 : i32
    %23 = arith.addi %c0_i32, %c4_i32 : i32
    %c1_i32 = arith.constant 1 : i32
    scf.for %arg6 = %c0_i32 to %23 step %c1_i32  : i32 {
      %c1_i32_49 = arith.constant 1 : i32
      %24 = arith.muli %arg6, %c1_i32_49 : i32
      %c0_i32_50 = arith.constant 0 : i32
      %25 = arith.addi %c0_i32_50, %24 : i32
      %c4_i32_51 = arith.constant 4 : i32
      %26 = arith.muli %25, %c4_i32_51 : i32
      %27 = tpu.assume_multiple %26, 4 : i32
      %cst = arith.constant 0.000000e+00 : f32
      %28 = vector.broadcast %cst : f32 to vector<4x16x8xf32>
      %29 = arith.index_cast %27 : i32 to index
      %c0_52 = arith.constant 0 : index
      %c0_53 = arith.constant 0 : index
      %30 = vector.load %arg5[%29, %c0_52, %c0_53] : memref<20x20x8xf32, #tpu.memory_space<vmem>>, vector<8x16x8xf32>
      %31 = vector.extract_strided_slice %30 {offsets = [0, 0, 0], sizes = [4, 16, 8], strides = [1, 1, 1]} : vector<8x16x8xf32> to vector<4x16x8xf32>
      %c0_54 = arith.constant 0 : index
      %32 = memref.load %arg2[%c0_54] : memref<25xf32, #tpu.memory_space<smem>>
      %33 = vector.broadcast %32 : f32 to vector<4x16x8xf32>
      %34 = arith.mulf %31, %33 : vector<4x16x8xf32>
      %35 = arith.addf %28, %34 : vector<4x16x8xf32>
      %36 = vector.extract_strided_slice %30 {offsets = [1, 0, 0], sizes = [4, 16, 8], strides = [1, 1, 1]} : vector<8x16x8xf32> to vector<4x16x8xf32>
      %c5 = arith.constant 5 : index
      %37 = memref.load %arg2[%c5] : memref<25xf32, #tpu.memory_space<smem>>
      %38 = vector.broadcast %37 : f32 to vector<4x16x8xf32>
      %39 = arith.mulf %36, %38 : vector<4x16x8xf32>
      %40 = arith.addf %35, %39 : vector<4x16x8xf32>
      %41 = vector.extract_strided_slice %30 {offsets = [2, 0, 0], sizes = [4, 16, 8], strides = [1, 1, 1]} : vector<8x16x8xf32> to vector<4x16x8xf32>
      %c10 = arith.constant 10 : index
      %42 = memref.load %arg2[%c10] : memref<25xf32, #tpu.memory_space<smem>>
      %43 = vector.broadcast %42 : f32 to vector<4x16x8xf32>
      %44 = arith.mulf %41, %43 : vector<4x16x8xf32>
      %45 = arith.addf %40, %44 : vector<4x16x8xf32>
      %46 = vector.extract_strided_slice %30 {offsets = [3, 0, 0], sizes = [4, 16, 8], strides = [1, 1, 1]} : vector<8x16x8xf32> to vector<4x16x8xf32>
      %c15_55 = arith.constant 15 : index
      %47 = memref.load %arg2[%c15_55] : memref<25xf32, #tpu.memory_space<smem>>
      %48 = vector.broadcast %47 : f32 to vector<4x16x8xf32>
      %49 = arith.mulf %46, %48 : vector<4x16x8xf32>
      %50 = arith.addf %45, %49 : vector<4x16x8xf32>
      %51 = vector.extract_strided_slice %30 {offsets = [4, 0, 0], sizes = [4, 16, 8], strides = [1, 1, 1]} : vector<8x16x8xf32> to vector<4x16x8xf32>
      %c20 = arith.constant 20 : index
      %52 = memref.load %arg2[%c20] : memref<25xf32, #tpu.memory_space<smem>>
      %53 = vector.broadcast %52 : f32 to vector<4x16x8xf32>
      %54 = arith.mulf %51, %53 : vector<4x16x8xf32>
      %55 = arith.addf %50, %54 : vector<4x16x8xf32>
      %56 = arith.index_cast %27 : i32 to index
      %c1_56 = arith.constant 1 : index
      %c0_57 = arith.constant 0 : index
      %57 = vector.load %arg5[%56, %c1_56, %c0_57] : memref<20x20x8xf32, #tpu.memory_space<vmem>>, vector<8x16x8xf32>
      %58 = vector.extract_strided_slice %57 {offsets = [0, 0, 0], sizes = [4, 16, 8], strides = [1, 1, 1]} : vector<8x16x8xf32> to vector<4x16x8xf32>
      %c1_58 = arith.constant 1 : index
      %59 = memref.load %arg2[%c1_58] : memref<25xf32, #tpu.memory_space<smem>>
      %60 = vector.broadcast %59 : f32 to vector<4x16x8xf32>
      %61 = arith.mulf %58, %60 : vector<4x16x8xf32>
      %62 = arith.addf %55, %61 : vector<4x16x8xf32>
      %63 = vector.extract_strided_slice %57 {offsets = [1, 0, 0], sizes = [4, 16, 8], strides = [1, 1, 1]} : vector<8x16x8xf32> to vector<4x16x8xf32>
      %c6 = arith.constant 6 : index
      %64 = memref.load %arg2[%c6] : memref<25xf32, #tpu.memory_space<smem>>
      %65 = vector.broadcast %64 : f32 to vector<4x16x8xf32>
      %66 = arith.mulf %63, %65 : vector<4x16x8xf32>
      %67 = arith.addf %62, %66 : vector<4x16x8xf32>
      %68 = vector.extract_strided_slice %57 {offsets = [2, 0, 0], sizes = [4, 16, 8], strides = [1, 1, 1]} : vector<8x16x8xf32> to vector<4x16x8xf32>
      %c11 = arith.constant 11 : index
      %69 = memref.load %arg2[%c11] : memref<25xf32, #tpu.memory_space<smem>>
      %70 = vector.broadcast %69 : f32 to vector<4x16x8xf32>
      %71 = arith.mulf %68, %70 : vector<4x16x8xf32>
      %72 = arith.addf %67, %71 : vector<4x16x8xf32>
      %73 = vector.extract_strided_slice %57 {offsets = [3, 0, 0], sizes = [4, 16, 8], strides = [1, 1, 1]} : vector<8x16x8xf32> to vector<4x16x8xf32>
      %c16_59 = arith.constant 16 : index
      %74 = memref.load %arg2[%c16_59] : memref<25xf32, #tpu.memory_space<smem>>
      %75 = vector.broadcast %74 : f32 to vector<4x16x8xf32>
      %76 = arith.mulf %73, %75 : vector<4x16x8xf32>
      %77 = arith.addf %72, %76 : vector<4x16x8xf32>
      %78 = vector.extract_strided_slice %57 {offsets = [4, 0, 0], sizes = [4, 16, 8], strides = [1, 1, 1]} : vector<8x16x8xf32> to vector<4x16x8xf32>
      %c21 = arith.constant 21 : index
      %79 = memref.load %arg2[%c21] : memref<25xf32, #tpu.memory_space<smem>>
      %80 = vector.broadcast %79 : f32 to vector<4x16x8xf32>
      %81 = arith.mulf %78, %80 : vector<4x16x8xf32>
      %82 = arith.addf %77, %81 : vector<4x16x8xf32>
      %83 = arith.index_cast %27 : i32 to index
      %c2_60 = arith.constant 2 : index
      %c0_61 = arith.constant 0 : index
      %84 = vector.load %arg5[%83, %c2_60, %c0_61] : memref<20x20x8xf32, #tpu.memory_space<vmem>>, vector<8x16x8xf32>
      %85 = vector.extract_strided_slice %84 {offsets = [0, 0, 0], sizes = [4, 16, 8], strides = [1, 1, 1]} : vector<8x16x8xf32> to vector<4x16x8xf32>
      %c2_62 = arith.constant 2 : index
      %86 = memref.load %arg2[%c2_62] : memref<25xf32, #tpu.memory_space<smem>>
      %87 = vector.broadcast %86 : f32 to vector<4x16x8xf32>
      %88 = arith.mulf %85, %87 : vector<4x16x8xf32>
      %89 = arith.addf %82, %88 : vector<4x16x8xf32>
      %90 = vector.extract_strided_slice %84 {offsets = [1, 0, 0], sizes = [4, 16, 8], strides = [1, 1, 1]} : vector<8x16x8xf32> to vector<4x16x8xf32>
      %c7 = arith.constant 7 : index
      %91 = memref.load %arg2[%c7] : memref<25xf32, #tpu.memory_space<smem>>
      %92 = vector.broadcast %91 : f32 to vector<4x16x8xf32>
      %93 = arith.mulf %90, %92 : vector<4x16x8xf32>
      %94 = arith.addf %89, %93 : vector<4x16x8xf32>
      %95 = vector.extract_strided_slice %84 {offsets = [2, 0, 0], sizes = [4, 16, 8], strides = [1, 1, 1]} : vector<8x16x8xf32> to vector<4x16x8xf32>
      %c12 = arith.constant 12 : index
      %96 = memref.load %arg2[%c12] : memref<25xf32, #tpu.memory_space<smem>>
      %97 = vector.broadcast %96 : f32 to vector<4x16x8xf32>
      %98 = arith.mulf %95, %97 : vector<4x16x8xf32>
      %99 = arith.addf %94, %98 : vector<4x16x8xf32>
      %100 = vector.extract_strided_slice %84 {offsets = [3, 0, 0], sizes = [4, 16, 8], strides = [1, 1, 1]} : vector<8x16x8xf32> to vector<4x16x8xf32>
      %c17 = arith.constant 17 : index
      %101 = memref.load %arg2[%c17] : memref<25xf32, #tpu.memory_space<smem>>
      %102 = vector.broadcast %101 : f32 to vector<4x16x8xf32>
      %103 = arith.mulf %100, %102 : vector<4x16x8xf32>
      %104 = arith.addf %99, %103 : vector<4x16x8xf32>
      %105 = vector.extract_strided_slice %84 {offsets = [4, 0, 0], sizes = [4, 16, 8], strides = [1, 1, 1]} : vector<8x16x8xf32> to vector<4x16x8xf32>
      %c22 = arith.constant 22 : index
      %106 = memref.load %arg2[%c22] : memref<25xf32, #tpu.memory_space<smem>>
      %107 = vector.broadcast %106 : f32 to vector<4x16x8xf32>
      %108 = arith.mulf %105, %107 : vector<4x16x8xf32>
      %109 = arith.addf %104, %108 : vector<4x16x8xf32>
      %110 = arith.index_cast %27 : i32 to index
      %c3_63 = arith.constant 3 : index
      %c0_64 = arith.constant 0 : index
      %111 = vector.load %arg5[%110, %c3_63, %c0_64] : memref<20x20x8xf32, #tpu.memory_space<vmem>>, vector<8x16x8xf32>
      %112 = vector.extract_strided_slice %111 {offsets = [0, 0, 0], sizes = [4, 16, 8], strides = [1, 1, 1]} : vector<8x16x8xf32> to vector<4x16x8xf32>
      %c3_65 = arith.constant 3 : index
      %113 = memref.load %arg2[%c3_65] : memref<25xf32, #tpu.memory_space<smem>>
      %114 = vector.broadcast %113 : f32 to vector<4x16x8xf32>
      %115 = arith.mulf %112, %114 : vector<4x16x8xf32>
      %116 = arith.addf %109, %115 : vector<4x16x8xf32>
      %117 = vector.extract_strided_slice %111 {offsets = [1, 0, 0], sizes = [4, 16, 8], strides = [1, 1, 1]} : vector<8x16x8xf32> to vector<4x16x8xf32>
      %c8 = arith.constant 8 : index
      %118 = memref.load %arg2[%c8] : memref<25xf32, #tpu.memory_space<smem>>
      %119 = vector.broadcast %118 : f32 to vector<4x16x8xf32>
      %120 = arith.mulf %117, %119 : vector<4x16x8xf32>
      %121 = arith.addf %116, %120 : vector<4x16x8xf32>
      %122 = vector.extract_strided_slice %111 {offsets = [2, 0, 0], sizes = [4, 16, 8], strides = [1, 1, 1]} : vector<8x16x8xf32> to vector<4x16x8xf32>
      %c13_66 = arith.constant 13 : index
      %123 = memref.load %arg2[%c13_66] : memref<25xf32, #tpu.memory_space<smem>>
      %124 = vector.broadcast %123 : f32 to vector<4x16x8xf32>
      %125 = arith.mulf %122, %124 : vector<4x16x8xf32>
      %126 = arith.addf %121, %125 : vector<4x16x8xf32>
      %127 = vector.extract_strided_slice %111 {offsets = [3, 0, 0], sizes = [4, 16, 8], strides = [1, 1, 1]} : vector<8x16x8xf32> to vector<4x16x8xf32>
      %c18_67 = arith.constant 18 : index
      %128 = memref.load %arg2[%c18_67] : memref<25xf32, #tpu.memory_space<smem>>
      %129 = vector.broadcast %128 : f32 to vector<4x16x8xf32>
      %130 = arith.mulf %127, %129 : vector<4x16x8xf32>
      %131 = arith.addf %126, %130 : vector<4x16x8xf32>
      %132 = vector.extract_strided_slice %111 {offsets = [4, 0, 0], sizes = [4, 16, 8], strides = [1, 1, 1]} : vector<8x16x8xf32> to vector<4x16x8xf32>
      %c23 = arith.constant 23 : index
      %133 = memref.load %arg2[%c23] : memref<25xf32, #tpu.memory_space<smem>>
      %134 = vector.broadcast %133 : f32 to vector<4x16x8xf32>
      %135 = arith.mulf %132, %134 : vector<4x16x8xf32>
      %136 = arith.addf %131, %135 : vector<4x16x8xf32>
      %137 = arith.index_cast %27 : i32 to index
      %c4_68 = arith.constant 4 : index
      %c0_69 = arith.constant 0 : index
      %138 = vector.load %arg5[%137, %c4_68, %c0_69] : memref<20x20x8xf32, #tpu.memory_space<vmem>>, vector<8x16x8xf32>
      %139 = vector.extract_strided_slice %138 {offsets = [0, 0, 0], sizes = [4, 16, 8], strides = [1, 1, 1]} : vector<8x16x8xf32> to vector<4x16x8xf32>
      %c4_70 = arith.constant 4 : index
      %140 = memref.load %arg2[%c4_70] : memref<25xf32, #tpu.memory_space<smem>>
      %141 = vector.broadcast %140 : f32 to vector<4x16x8xf32>
      %142 = arith.mulf %139, %141 : vector<4x16x8xf32>
      %143 = arith.addf %136, %142 : vector<4x16x8xf32>
      %144 = vector.extract_strided_slice %138 {offsets = [1, 0, 0], sizes = [4, 16, 8], strides = [1, 1, 1]} : vector<8x16x8xf32> to vector<4x16x8xf32>
      %c9 = arith.constant 9 : index
      %145 = memref.load %arg2[%c9] : memref<25xf32, #tpu.memory_space<smem>>
      %146 = vector.broadcast %145 : f32 to vector<4x16x8xf32>
      %147 = arith.mulf %144, %146 : vector<4x16x8xf32>
      %148 = arith.addf %143, %147 : vector<4x16x8xf32>
      %149 = vector.extract_strided_slice %138 {offsets = [2, 0, 0], sizes = [4, 16, 8], strides = [1, 1, 1]} : vector<8x16x8xf32> to vector<4x16x8xf32>
      %c14_71 = arith.constant 14 : index
      %150 = memref.load %arg2[%c14_71] : memref<25xf32, #tpu.memory_space<smem>>
      %151 = vector.broadcast %150 : f32 to vector<4x16x8xf32>
      %152 = arith.mulf %149, %151 : vector<4x16x8xf32>
      %153 = arith.addf %148, %152 : vector<4x16x8xf32>
      %154 = vector.extract_strided_slice %138 {offsets = [3, 0, 0], sizes = [4, 16, 8], strides = [1, 1, 1]} : vector<8x16x8xf32> to vector<4x16x8xf32>
      %c19_72 = arith.constant 19 : index
      %155 = memref.load %arg2[%c19_72] : memref<25xf32, #tpu.memory_space<smem>>
      %156 = vector.broadcast %155 : f32 to vector<4x16x8xf32>
      %157 = arith.mulf %154, %156 : vector<4x16x8xf32>
      %158 = arith.addf %153, %157 : vector<4x16x8xf32>
      %159 = vector.extract_strided_slice %138 {offsets = [4, 0, 0], sizes = [4, 16, 8], strides = [1, 1, 1]} : vector<8x16x8xf32> to vector<4x16x8xf32>
      %c24 = arith.constant 24 : index
      %160 = memref.load %arg2[%c24] : memref<25xf32, #tpu.memory_space<smem>>
      %161 = vector.broadcast %160 : f32 to vector<4x16x8xf32>
      %162 = arith.mulf %159, %161 : vector<4x16x8xf32>
      %163 = arith.addf %158, %162 : vector<4x16x8xf32>
      %c0_73 = arith.constant 0 : index
      %164 = arith.index_cast %27 : i32 to index
      %c0_74 = arith.constant 0 : index
      %c0_75 = arith.constant 0 : index
      %165 = vector.load %arg4[%c0_73, %164, %c0_74, %c0_75] : memref<1x16x16x8xf32, #tpu.memory_space<vmem>>, vector<1x4x16x8xf32>
      %166 = vector.shape_cast %165 : vector<1x4x16x8xf32> to vector<4x16x8xf32>
      %167 = vector.shape_cast %163 : vector<4x16x8xf32> to vector<1x4x16x8xf32>
      tpu.vector_store %arg4[%c0_73, %164, %c0_74, %c0_75], %167 {strides = array<i32>} : memref<1x16x16x8xf32, #tpu.memory_space<vmem>>, vector<1x4x16x8xf32>,
    }
    %c4_i32_48 = arith.constant 4 : i32
    return
  }
  func.func @transform_0(%arg0: i32, %arg1: i32) -> i32 {
    %c0_i32 = arith.constant 0 : i32
    %c0_i32_0 = arith.constant 0 : i32
    return %c0_i32 : i32
  }
  func.func @transform_1(%arg0: i32, %arg1: i32) -> (i32, i32, i32, i32) {
    %c0_i32 = arith.constant 0 : i32
    %c0_i32_0 = arith.constant 0 : i32
    %c0_i32_1 = arith.constant 0 : i32
    return %arg0, %c0_i32, %c0_i32_0, %arg1 : i32, i32, i32, i32
  }
  func.func @transform_2(%arg0: i32, %arg1: i32) -> (i32, i32, i32, i32) {
    %c0_i32 = arith.constant 0 : i32
    %c0_i32_0 = arith.constant 0 : i32
    %c0_i32_1 = arith.constant 0 : i32
    return %arg0, %c0_i32, %c0_i32_0, %arg1 : i32, i32, i32, i32
  }
}

</mosaic_0001>

<llo_original>
// kernel: tpu_custom_call.1
$region0: #{tpu_custom_call.1}
  #allocation0 [shape = 'u32[]', space=smem, size = 0x4, offset = 0x4, fixed_abs, tag = 'smem constant byte address 0x4 - core index']
  #allocation1 [shape = 'u32[144,128]{1,0:T(1,128)}', space=vmem, size = 0x12000, scoped, tag = 'internal scratch']
  #allocation2 [shape = 'f32[20,20,8]{2,1,0:T(8,128)}', space=vmem, size = 0x3c000, scoped, tag = 'scratch operand']
  %s0 = inlined_call_operand.vmem [shape: f32[25], index: 0, kind: input, shape index: {}]
  %s1 = inlined_call_operand.vmem [shape: f32[1,16,16,8], index: 1, kind: input, shape index: {}]
  %s2 = inlined_call_operand.vmem [shape: f32[1,16,16,8], index: 2, kind: output, shape index: {}]
  %s3 = sld [smem:[#allocation0]]
  $region29: #{tpu_custom_call.1} parent=0
    _
  %s5 = ssub.s32 1, %s3
  %s6 = scalar_select 0, %s5, %s3
  $region1: #{tpu_custom_call.1} parent=0
    #allocation3 [shape = 'u8[512]{0}', space=smem, size = 0x200, scoped, tag = 'input window, operand 0, single buffered']
    #allocation4 [shape = 's32[1]{0}', space=sflag, size = 0x4, scoped, tag = 'scoped memory for tpu_custom_call.1']
    %7 = vsyncpa [#allocation4], 0
    // Predicated region
    $region2: #{tpu_custom_call.1} parent=1 // pred_check
      _
    $region3: #{tpu_custom_call.1} parent=1 // pred_check_branch
      %9 = sbr.rel (0) target = $region5
    $region4: #{tpu_custom_call.1} parent=1 // pred_region
      %s11 = ssub.s32 16, 16
      %12 = vsyncadd [#allocation4], %s11
      %s14 = sshll.u32 %s0, 4
      %s15 = int_to_ptr.vmem [resolvable:$true] %s14
      %17 = dma.vmem_to_smem %s15, 16, [#allocation3], [#allocation4]
    $region5: #{tpu_custom_call.1} parent=1 // pred_fallthru
      _
    // Predicated region
    $region6: #{tpu_custom_call.1} parent=1 // pred_check
      _
    $region7: #{tpu_custom_call.1} parent=1 // pred_check_branch
      %19 = sbr.rel (0) target = $region9
    $region8: #{tpu_custom_call.1} parent=1 // pred_region
      _
    $region9: #{tpu_custom_call.1} parent=1 // pred_fallthru
      _
    // Predicated region
    $region10: #{tpu_custom_call.1} parent=1 // pred_check
      _
    $region11: #{tpu_custom_call.1} parent=1 // pred_check_branch
      %21 = sbr.rel (0) target = $region13
    $region12: #{tpu_custom_call.1} parent=1 // pred_region
      %22 = dma.done [#allocation4], 16
    $region13: #{tpu_custom_call.1} parent=1 // pred_fallthru
      _
    %23 = sfence
    %v24 = vld [vmem:[%s1] sm:$0xff]
    %v25 = vld [vmem:[%s1 + $0x8] sm:$0xff]
    %v26 = vld [vmem:[%s1 + $0x10] sm:$0xff]
    %v27 = vld [vmem:[%s1 + $0x18] sm:$0xff]
    %v28 = vld [vmem:[%s1 + $0x20] sm:$0xff]
    %v29 = vld [vmem:[%s1 + $0x28] sm:$0xff]
    %v30 = vld [vmem:[%s1 + $0x30] sm:$0xff]
    %v31 = vld [vmem:[%s1 + $0x38] sm:$0xff]
    %v32 = vld [vmem:[%s1 + $0x40] sm:$0xff]
    %v33 = vld [vmem:[%s1 + $0x48] sm:$0xff]
    %v34 = vld [vmem:[%s1 + $0x50] sm:$0xff]
    %v35 = vld [vmem:[%s1 + $0x58] sm:$0xff]
    %v36 = vld [vmem:[%s1 + $0x60] sm:$0xff]
    %v37 = vld [vmem:[%s1 + $0x68] sm:$0xff]
    %v38 = vld [vmem:[%s1 + $0x70] sm:$0xff]
    %v39 = vld [vmem:[%s1 + $0x78] sm:$0xff]
    %v40 = vld [vmem:[%s1 + $0x80] sm:$0xff]
    %v41 = vld [vmem:[%s1 + $0x88] sm:$0xff]
    %v42 = vld [vmem:[%s1 + $0x90] sm:$0xff]
    %v43 = vld [vmem:[%s1 + $0x98] sm:$0xff]
    %v44 = vld [vmem:[%s1 + $0xa0] sm:$0xff]
    %v45 = vld [vmem:[%s1 + $0xa8] sm:$0xff]
    %v46 = vld [vmem:[%s1 + $0xb0] sm:$0xff]
    %v47 = vld [vmem:[%s1 + $0xb8] sm:$0xff]
    %v48 = vld [vmem:[%s1 + $0xc0] sm:$0xff]
    %v49 = vld [vmem:[%s1 + $0xc8] sm:$0xff]
    %v50 = vld [vmem:[%s1 + $0xd0] sm:$0xff]
    %v51 = vld [vmem:[%s1 + $0xd8] sm:$0xff]
    %v52 = vld [vmem:[%s1 + $0xe0] sm:$0xff]
    %v53 = vld [vmem:[%s1 + $0xe8] sm:$0xff]
    %v54 = vld [vmem:[%s1 + $0xf0] sm:$0xff]
    %v55 = vld [vmem:[%s1 + $0xf8] sm:$0xff]
    %s56 = scalar_lea.vmem [#allocation2], 48
    %vm57 = vcmask 64512
    %58 = vst.msk [vmem:[%s56 + $0x2] sm:$0xff] %vm57, %v24
    %59 = vst.msk [vmem:[%s56 + $0xa] sm:$0xff] %vm57, %v25
    %60 = vst.msk [vmem:[%s56 + $0x1a] sm:$0xff] %vm57, %v26
    %61 = vst.msk [vmem:[%s56 + $0x22] sm:$0xff] %vm57, %v27
    %62 = vst.msk [vmem:[%s56 + $0x32] sm:$0xff] %vm57, %v28
    %63 = vst.msk [vmem:[%s56 + $0x3a] sm:$0xff] %vm57, %v29
    %64 = vst.msk [vmem:[%s56 + $0x4a] sm:$0xff] %vm57, %v30
    %65 = vst.msk [vmem:[%s56 + $0x52] sm:$0xff] %vm57, %v31
    %66 = vst.msk [vmem:[%s56 + $0x62] sm:$0xff] %vm57, %v32
    %67 = vst.msk [vmem:[%s56 + $0x6a] sm:$0xff] %vm57, %v33
    %68 = vst.msk [vmem:[%s56 + $0x7a] sm:$0xff] %vm57, %v34
    %69 = vst.msk [vmem:[%s56 + $0x82] sm:$0xff] %vm57, %v35
    %70 = vst.msk [vmem:[%s56 + $0x92] sm:$0xff] %vm57, %v36
    %71 = vst.msk [vmem:[%s56 + $0x9a] sm:$0xff] %vm57, %v37
    %72 = vst.msk [vmem:[%s56 + $0xaa] sm:$0xff] %vm57, %v38
    %73 = vst.msk [vmem:[%s56 + $0xb2] sm:$0xff] %vm57, %v39
    %74 = vst.msk [vmem:[%s56 + $0xc2] sm:$0xff] %vm57, %v40
    %75 = vst.msk [vmem:[%s56 + $0xca] sm:$0xff] %vm57, %v41
    %76 = vst.msk [vmem:[%s56 + $0xda] sm:$0xff] %vm57, %v42
    %77 = vst.msk [vmem:[%s56 + $0xe2] sm:$0xff] %vm57, %v43
    %78 = vst.msk [vmem:[%s56 + $0xf2] sm:$0xff] %vm57, %v44
    %79 = vst.msk [vmem:[%s56 + $0xfa] sm:$0xff] %vm57, %v45
    %80 = vst.msk [vmem:[%s56 + $0x10a] sm:$0xff] %vm57, %v46
    %81 = vst.msk [vmem:[%s56 + $0x112] sm:$0xff] %vm57, %v47
    %82 = vst.msk [vmem:[%s56 + $0x122] sm:$0xff] %vm57, %v48
    %83 = vst.msk [vmem:[%s56 + $0x12a] sm:$0xff] %vm57, %v49
    %84 = vst.msk [vmem:[%s56 + $0x13a] sm:$0xff] %vm57, %v50
    %85 = vst.msk [vmem:[%s56 + $0x142] sm:$0xff] %vm57, %v51
    %86 = vst.msk [vmem:[%s56 + $0x152] sm:$0xff] %vm57, %v52
    %87 = vst.msk [vmem:[%s56 + $0x15a] sm:$0xff] %vm57, %v53
    %88 = vst.msk [vmem:[%s56 + $0x16a] sm:$0xff] %vm57, %v54
    %89 = vst.msk [vmem:[%s56 + $0x172] sm:$0xff] %vm57, %v55
    %s90 = scalar_lea.vmem %s1, 16
    %v91 = vld [vmem:[%s90] sm:$0xff]
    %v92 = vld [vmem:[%s90 + $0x8] sm:$0xff]
    %s93 = scalar_lea.vmem [#allocation2], 24
    %94 = vst.msk [vmem:[%s93 + $0x2] sm:$0xff] %vm57, %v91
    %95 = vst.msk [vmem:[%s93 + $0xa] sm:$0xff] %vm57, %v92
    %s96 = scalar_lea.vmem %s1, 224
    %v97 = vld [vmem:[%s96] sm:$0xff]
    %v98 = vld [vmem:[%s96 + $0x8] sm:$0xff]
    %s99 = scalar_lea.vmem [#allocation2], 432
    %100 = vst.msk [vmem:[%s99 + $0x2] sm:$0xff] %vm57, %v97
    %101 = vst.msk [vmem:[%s99 + $0xa] sm:$0xff] %vm57, %v98
    %s102 = scalar_lea.vmem %s1, 32
    %v103 = vld [vmem:[%s102] sm:$0xff]
    %v104 = vld [vmem:[%s102 + $0x8] sm:$0xff]
    %105 = vst.msk [vmem:[#allocation2 + $0x2] sm:$0xff] %vm57, %v103
    %106 = vst.msk [vmem:[#allocation2 + $0xa] sm:$0xff] %vm57, %v104
    %s107 = scalar_lea.vmem %s1, 208
    %v108 = vld [vmem:[%s107] sm:$0xff]
    %v109 = vld [vmem:[%s107 + $0x8] sm:$0xff]
    %s110 = scalar_lea.vmem [#allocation2], 456
    %111 = vst.msk [vmem:[%s110 + $0x2] sm:$0xff] %vm57, %v108
    %112 = vst.msk [vmem:[%s110 + $0xa] sm:$0xff] %vm57, %v109
    %v113 = vld [vmem:[#allocation2 + $0x3] sm:$0x1]
    %v114 = vld [vmem:[#allocation2 + $0x1b] sm:$0x1]
    %v115 = vld [vmem:[#allocation2 + $0x33] sm:$0x1]
    %v116 = vld [vmem:[#allocation2 + $0x4b] sm:$0x1]
    %v117 = vld [vmem:[#allocation2 + $0x63] sm:$0x1]
    %v118 = vld [vmem:[#allocation2 + $0x7b] sm:$0x1]
    %v119 = vld [vmem:[#allocation2 + $0x93] sm:$0x1]
    %v120 = vld [vmem:[#allocation2 + $0xab] sm:$0x1]
    %v121 = vld [vmem:[#allocation2 + $0xc3] sm:$0x1]
    %v122 = vld [vmem:[#allocation2 + $0xdb] sm:$0x1]
    %v123 = vld [vmem:[#allocation2 + $0xf3] sm:$0x1]
    %v124 = vld [vmem:[#allocation2 + $0x10b] sm:$0x1]
    %v125 = vld [vmem:[#allocation2 + $0x123] sm:$0x1]
    %v126 = vld [vmem:[#allocation2 + $0x13b] sm:$0x1]
    %v127 = vld [vmem:[#allocation2 + $0x153] sm:$0x1]
    %v128 = vld [vmem:[#allocation2 + $0x16b] sm:$0x1]
    %v129 = vld [vmem:[#allocation2 + $0x183] sm:$0x1]
    %v130 = vld [vmem:[#allocation2 + $0x19b] sm:$0x1]
    %v131 = vld [vmem:[#allocation2 + $0x1b3] sm:$0x1]
    %v132 = vld [vmem:[#allocation2 + $0x1cb] sm:$0x1]
    %vm133 = vcmask 57344
    %134 = vst.msk [vmem:[#allocation2 + $0x1] sm:$0x1] %vm133, %v113
    %135 = vst.msk [vmem:[#allocation2 + $0x19] sm:$0x1] %vm133, %v114
    %136 = vst.msk [vmem:[#allocation2 + $0x31] sm:$0x1] %vm133, %v115
    %137 = vst.msk [vmem:[#allocation2 + $0x49] sm:$0x1] %vm133, %v116
    %138 = vst.msk [vmem:[#allocation2 + $0x61] sm:$0x1] %vm133, %v117
    %139 = vst.msk [vmem:[#allocation2 + $0x79] sm:$0x1] %vm133, %v118
    %140 = vst.msk [vmem:[#allocation2 + $0x91] sm:$0x1] %vm133, %v119
    %141 = vst.msk [vmem:[#allocation2 + $0xa9] sm:$0x1] %vm133, %v120
    %142 = vst.msk [vmem:[#allocation2 + $0xc1] sm:$0x1] %vm133, %v121
    %143 = vst.msk [vmem:[#allocation2 + $0xd9] sm:$0x1] %vm133, %v122
    %144 = vst.msk [vmem:[#allocation2 + $0xf1] sm:$0x1] %vm133, %v123
    %145 = vst.msk [vmem:[#allocation2 + $0x109] sm:$0x1] %vm133, %v124
    %146 = vst.msk [vmem:[#allocation2 + $0x121] sm:$0x1] %vm133, %v125
    %147 = vst.msk [vmem:[#allocation2 + $0x139] sm:$0x1] %vm133, %v126
    %148 = vst.msk [vmem:[#allocation2 + $0x151] sm:$0x1] %vm133, %v127
    %149 = vst.msk [vmem:[#allocation2 + $0x169] sm:$0x1] %vm133, %v128
    %150 = vst.msk [vmem:[#allocation2 + $0x181] sm:$0x1] %vm133, %v129
    %151 = vst.msk [vmem:[#allocation2 + $0x199] sm:$0x1] %vm133, %v130
    %152 = vst.msk [vmem:[#allocation2 + $0x1b1] sm:$0x1] %vm133, %v131
    %153 = vst.msk [vmem:[#allocation2 + $0x1c9] sm:$0x1] %vm133, %v132
    %v154 = vld [vmem:[#allocation2 + $0x10] sm:$0x1]
    %v155 = vld [vmem:[#allocation2 + $0x28] sm:$0x1]
    %v156 = vld [vmem:[#allocation2 + $0x40] sm:$0x1]
    %v157 = vld [vmem:[#allocation2 + $0x58] sm:$0x1]
    %v158 = vld [vmem:[#allocation2 + $0x70] sm:$0x1]
    %v159 = vld [vmem:[#allocation2 + $0x88] sm:$0x1]
    %v160 = vld [vmem:[#allocation2 + $0xa0] sm:$0x1]
    %v161 = vld [vmem:[#allocation2 + $0xb8] sm:$0x1]
    %v162 = vld [vmem:[#allocation2 + $0xd0] sm:$0x1]
    %v163 = vld [vmem:[#allocation2 + $0xe8] sm:$0x1]
    %v164 = vld [vmem:[#allocation2 + $0x100] sm:$0x1]
    %v165 = vld [vmem:[#allocation2 + $0x118] sm:$0x1]
    %v166 = vld [vmem:[#allocation2 + $0x130] sm:$0x1]
    %v167 = vld [vmem:[#allocation2 + $0x148] sm:$0x1]
    %v168 = vld [vmem:[#allocation2 + $0x160] sm:$0x1]
    %v169 = vld [vmem:[#allocation2 + $0x178] sm:$0x1]
    %v170 = vld [vmem:[#allocation2 + $0x190] sm:$0x1]
    %v171 = vld [vmem:[#allocation2 + $0x1a8] sm:$0x1]
    %v172 = vld [vmem:[#allocation2 + $0x1c0] sm:$0x1]
    %v173 = vld [vmem:[#allocation2 + $0x1d8] sm:$0x1]
    %174 = vst.msk [vmem:[#allocation2 + $0x12] sm:$0x1] %vm133, %v154
    %175 = vst.msk [vmem:[#allocation2 + $0x2a] sm:$0x1] %vm133, %v155
    %176 = vst.msk [vmem:[#allocation2 + $0x42] sm:$0x1] %vm133, %v156
    %177 = vst.msk [vmem:[#allocation2 + $0x5a] sm:$0x1] %vm133, %v157
    %178 = vst.msk [vmem:[#allocation2 + $0x72] sm:$0x1] %vm133, %v158
    %179 = vst.msk [vmem:[#allocation2 + $0x8a] sm:$0x1] %vm133, %v159
    %180 = vst.msk [vmem:[#allocation2 + $0xa2] sm:$0x1] %vm133, %v160
    %181 = vst.msk [vmem:[#allocation2 + $0xba] sm:$0x1] %vm133, %v161
    %182 = vst.msk [vmem:[#allocation2 + $0xd2] sm:$0x1] %vm133, %v162
    %183 = vst.msk [vmem:[#allocation2 + $0xea] sm:$0x1] %vm133, %v163
    %184 = vst.msk [vmem:[#allocation2 + $0x102] sm:$0x1] %vm133, %v164
    %185 = vst.msk [vmem:[#allocation2 + $0x11a] sm:$0x1] %vm133, %v165
    %186 = vst.msk [vmem:[#allocation2 + $0x132] sm:$0x1] %vm133, %v166
    %187 = vst.msk [vmem:[#allocation2 + $0x14a] sm:$0x1] %vm133, %v167
    %188 = vst.msk [vmem:[#allocation2 + $0x162] sm:$0x1] %vm133, %v168
    %189 = vst.msk [vmem:[#allocation2 + $0x17a] sm:$0x1] %vm133, %v169
    %190 = vst.msk [vmem:[#allocation2 + $0x192] sm:$0x1] %vm133, %v170
    %191 = vst.msk [vmem:[#allocation2 + $0x1aa] sm:$0x1] %vm133, %v171
    %192 = vst.msk [vmem:[#allocation2 + $0x1c2] sm:$0x1] %vm133, %v172
    %193 = vst.msk [vmem:[#allocation2 + $0x1da] sm:$0x1] %vm133, %v173
    %v194 = vld [vmem:[#allocation2 + $0x4] sm:$0x1]
    %v195 = vld [vmem:[#allocation2 + $0x1c] sm:$0x1]
    %v196 = vld [vmem:[#allocation2 + $0x34] sm:$0x1]
    %v197 = vld [vmem:[#allocation2 + $0x4c] sm:$0x1]
    %v198 = vld [vmem:[#allocation2 + $0x64] sm:$0x1]
    %v199 = vld [vmem:[#allocation2 + $0x7c] sm:$0x1]
    %v200 = vld [vmem:[#allocation2 + $0x94] sm:$0x1]
    %v201 = vld [vmem:[#allocation2 + $0xac] sm:$0x1]
    %v202 = vld [vmem:[#allocation2 + $0xc4] sm:$0x1]
    %v203 = vld [vmem:[#allocation2 + $0xdc] sm:$0x1]
    %v204 = vld [vmem:[#allocation2 + $0xf4] sm:$0x1]
    %v205 = vld [vmem:[#allocation2 + $0x10c] sm:$0x1]
    %v206 = vld [vmem:[#allocation2 + $0x124] sm:$0x1]
    %v207 = vld [vmem:[#allocation2 + $0x13c] sm:$0x1]
    %v208 = vld [vmem:[#allocation2 + $0x154] sm:$0x1]
    %v209 = vld [vmem:[#allocation2 + $0x16c] sm:$0x1]
    %v210 = vld [vmem:[#allocation2 + $0x184] sm:$0x1]
    %v211 = vld [vmem:[#allocation2 + $0x19c] sm:$0x1]
    %v212 = vld [vmem:[#allocation2 + $0x1b4] sm:$0x1]
    %v213 = vld [vmem:[#allocation2 + $0x1cc] sm:$0x1]
    %214 = vst.msk [vmem:[#allocation2] sm:$0x1] %vm133, %v194
    %215 = vst.msk [vmem:[#allocation2 + $0x18] sm:$0x1] %vm133, %v195
    %216 = vst.msk [vmem:[#allocation2 + $0x30] sm:$0x1] %vm133, %v196
    %217 = vst.msk [vmem:[#allocation2 + $0x48] sm:$0x1] %vm133, %v197
    %218 = vst.msk [vmem:[#allocation2 + $0x60] sm:$0x1] %vm133, %v198
    %219 = vst.msk [vmem:[#allocation2 + $0x78] sm:$0x1] %vm133, %v199
    %220 = vst.msk [vmem:[#allocation2 + $0x90] sm:$0x1] %vm133, %v200
    %221 = vst.msk [vmem:[#allocation2 + $0xa8] sm:$0x1] %vm133, %v201
    %222 = vst.msk [vmem:[#allocation2 + $0xc0] sm:$0x1] %vm133, %v202
    %223 = vst.msk [vmem:[#allocation2 + $0xd8] sm:$0x1] %vm133, %v203
    %224 = vst.msk [vmem:[#allocation2 + $0xf0] sm:$0x1] %vm133, %v204
    %225 = vst.msk [vmem:[#allocation2 + $0x108] sm:$0x1] %vm133, %v205
    %226 = vst.msk [vmem:[#allocation2 + $0x120] sm:$0x1] %vm133, %v206
    %227 = vst.msk [vmem:[#allocation2 + $0x138] sm:$0x1] %vm133, %v207
    %228 = vst.msk [vmem:[#allocation2 + $0x150] sm:$0x1] %vm133, %v208
    %229 = vst.msk [vmem:[#allocation2 + $0x168] sm:$0x1] %vm133, %v209
    %230 = vst.msk [vmem:[#allocation2 + $0x180] sm:$0x1] %vm133, %v210
    %231 = vst.msk [vmem:[#allocation2 + $0x198] sm:$0x1] %vm133, %v211
    %232 = vst.msk [vmem:[#allocation2 + $0x1b0] sm:$0x1] %vm133, %v212
    %233 = vst.msk [vmem:[#allocation2 + $0x1c8] sm:$0x1] %vm133, %v213
    %v234 = vld [vmem:[#allocation2 + $0xf] sm:$0x1]
    %v235 = vld [vmem:[#allocation2 + $0x27] sm:$0x1]
    %v236 = vld [vmem:[#allocation2 + $0x3f] sm:$0x1]
    %v237 = vld [vmem:[#allocation2 + $0x57] sm:$0x1]
    %v238 = vld [vmem:[#allocation2 + $0x6f] sm:$0x1]
    %v239 = vld [vmem:[#allocation2 + $0x87] sm:$0x1]
    %v240 = vld [vmem:[#allocation2 + $0x9f] sm:$0x1]
    %v241 = vld [vmem:[#allocation2 + $0xb7] sm:$0x1]
    %v242 = vld [vmem:[#allocation2 + $0xcf] sm:$0x1]
    %v243 = vld [vmem:[#allocation2 + $0xe7] sm:$0x1]
    %v244 = vld [vmem:[#allocation2 + $0xff] sm:$0x1]
    %v245 = vld [vmem:[#allocation2 + $0x117] sm:$0x1]
    %v246 = vld [vmem:[#allocation2 + $0x12f] sm:$0x1]
    %v247 = vld [vmem:[#allocation2 + $0x147] sm:$0x1]
    %v248 = vld [vmem:[#allocation2 + $0x15f] sm:$0x1]
    %v249 = vld [vmem:[#allocation2 + $0x177] sm:$0x1]
    %v250 = vld [vmem:[#allocation2 + $0x18f] sm:$0x1]
    %v251 = vld [vmem:[#allocation2 + $0x1a7] sm:$0x1]
    %v252 = vld [vmem:[#allocation2 + $0x1bf] sm:$0x1]
    %v253 = vld [vmem:[#allocation2 + $0x1d7] sm:$0x1]
    %254 = vst.msk [vmem:[#allocation2 + $0x13] sm:$0x1] %vm133, %v234
    %255 = vst.msk [vmem:[#allocation2 + $0x2b] sm:$0x1] %vm133, %v235
    %256 = vst.msk [vmem:[#allocation2 + $0x43] sm:$0x1] %vm133, %v236
    %257 = vst.msk [vmem:[#allocation2 + $0x5b] sm:$0x1] %vm133, %v237
    %258 = vst.msk [vmem:[#allocation2 + $0x73] sm:$0x1] %vm133, %v238
    %259 = vst.msk [vmem:[#allocation2 + $0x8b] sm:$0x1] %vm133, %v239
    %260 = vst.msk [vmem:[#allocation2 + $0xa3] sm:$0x1] %vm133, %v240
    %261 = vst.msk [vmem:[#allocation2 + $0xbb] sm:$0x1] %vm133, %v241
    %262 = vst.msk [vmem:[#allocation2 + $0xd3] sm:$0x1] %vm133, %v242
    %263 = vst.msk [vmem:[#allocation2 + $0xeb] sm:$0x1] %vm133, %v243
    %264 = vst.msk [vmem:[#allocation2 + $0x103] sm:$0x1] %vm133, %v244
    %265 = vst.msk [vmem:[#allocation2 + $0x11b] sm:$0x1] %vm133, %v245
    %266 = vst.msk [vmem:[#allocation2 + $0x133] sm:$0x1] %vm133, %v246
    %267 = vst.msk [vmem:[#allocation2 + $0x14b] sm:$0x1] %vm133, %v247
    %268 = vst.msk [vmem:[#allocation2 + $0x163] sm:$0x1] %vm133, %v248
    %269 = vst.msk [vmem:[#allocation2 + $0x17b] sm:$0x1] %vm133, %v249
    %270 = vst.msk [vmem:[#allocation2 + $0x193] sm:$0x1] %vm133, %v250
    %271 = vst.msk [vmem:[#allocation2 + $0x1ab] sm:$0x1] %vm133, %v251
    %272 = vst.msk [vmem:[#allocation2 + $0x1c3] sm:$0x1] %vm133, %v252
    %273 = vst.msk [vmem:[#allocation2 + $0x1db] sm:$0x1] %vm133, %v253
    loop: start=0, step=1, limit=4
    $region14: #{tpu_custom_call.1} parent=1 // loop_pre_header
      _
    $region15: #{tpu_custom_call.1} parent=1 // loop_header
      %s275 = sphi 0, %s279
      %p276 = scmp.ge.s32.totalorder %s275, 4
    $region16: #{tpu_custom_call.1} parent=1 // loop_header_branch
      %278 = sbr.rel (%p276) target = $region20
    $region17: #{tpu_custom_call.1} parent=1 // loop_body
      %s280 = smul.u32 %s275, 4
      %s281 = smul.u32 %s280, 24
      %s282 = scalar_lea.vmem [#allocation2], %s281
      %v283 = vld [vmem:[%s282] sm:$0xff]
      %v284 = vld [vmem:[%s282 + $0x8] sm:$0xff]
      %v285 = vld [vmem:[%s282 + $0x18] sm:$0xff]
      %v286 = vld [vmem:[%s282 + $0x20] sm:$0xff]
      %v287 = vld [vmem:[%s282 + $0x30] sm:$0xff]
      %v288 = vld [vmem:[%s282 + $0x38] sm:$0xff]
      %v289 = vld [vmem:[%s282 + $0x48] sm:$0xff]
      %v290 = vld [vmem:[%s282 + $0x50] sm:$0xff]
      %v291 = vld [vmem:[%s282 + $0x60] sm:$0xff]
      %v292 = vld [vmem:[%s282 + $0x68] sm:$0xff]
      %v293 = vld [vmem:[%s282 + $0x78] sm:$0xff]
      %v294 = vld [vmem:[%s282 + $0x80] sm:$0xff]
      %v295 = vld [vmem:[%s282 + $0x90] sm:$0xff]
      %v296 = vld [vmem:[%s282 + $0x98] sm:$0xff]
      %v297 = vld [vmem:[%s282 + $0xa8] sm:$0xff]
      %v298 = vld [vmem:[%s282 + $0xb0] sm:$0xff]
      %s299 = sld [smem:[#allocation3]]
      %v300 = vstv %s299
      %v301 = vmul.f32 %v283, %v300
      %v302 = vmul.f32 %v284, %v300
      %v303 = vmul.f32 %v285, %v300
      %v304 = vmul.f32 %v286, %v300
      %v305 = vmul.f32 %v287, %v300
      %v306 = vmul.f32 %v288, %v300
      %v307 = vmul.f32 %v289, %v300
      %v308 = vmul.f32 %v290, %v300
      %v309 = vadd.f32 %v301, 0.0
      %v310 = vadd.f32 %v302, 0.0
      %v311 = vadd.f32 %v303, 0.0
      %v312 = vadd.f32 %v304, 0.0
      %v313 = vadd.f32 %v305, 0.0
      %v314 = vadd.f32 %v306, 0.0
      %v315 = vadd.f32 %v307, 0.0
      %v316 = vadd.f32 %v308, 0.0
      %s317 = sld [smem:[#allocation3 + $0x5]]
      %v318 = vstv %s317
      %v319 = vmul.f32 %v285, %v318
      %v320 = vmul.f32 %v286, %v318
      %v321 = vmul.f32 %v287, %v318
      %v322 = vmul.f32 %v288, %v318
      %v323 = vmul.f32 %v289, %v318
      %v324 = vmul.f32 %v290, %v318
      %v325 = vmul.f32 %v291, %v318
      %v326 = vmul.f32 %v292, %v318
      %v327 = vadd.f32 %v309, %v319
      %v328 = vadd.f32 %v310, %v320
      %v329 = vadd.f32 %v311, %v321
      %v330 = vadd.f32 %v312, %v322
      %v331 = vadd.f32 %v313, %v323
      %v332 = vadd.f32 %v314, %v324
      %v333 = vadd.f32 %v315, %v325
      %v334 = vadd.f32 %v316, %v326
      %s335 = sld [smem:[#allocation3 + $0xa]]
      %v336 = vstv %s335
      %v337 = vmul.f32 %v287, %v336
      %v338 = vmul.f32 %v288, %v336
      %v339 = vmul.f32 %v289, %v336
      %v340 = vmul.f32 %v290, %v336
      %v341 = vmul.f32 %v291, %v336
      %v342 = vmul.f32 %v292, %v336
      %v343 = vmul.f32 %v293, %v336
      %v344 = vmul.f32 %v294, %v336
      %v345 = vadd.f32 %v327, %v337
      %v346 = vadd.f32 %v328, %v338
      %v347 = vadd.f32 %v329, %v339
      %v348 = vadd.f32 %v330, %v340
      %v349 = vadd.f32 %v331, %v341
      %v350 = vadd.f32 %v332, %v342
      %v351 = vadd.f32 %v333, %v343
      %v352 = vadd.f32 %v334, %v344
      %s353 = sld [smem:[#allocation3 + $0xf]]
      %v354 = vstv %s353
      %v355 = vmul.f32 %v289, %v354
      %v356 = vmul.f32 %v290, %v354
      %v357 = vmul.f32 %v291, %v354
      %v358 = vmul.f32 %v292, %v354
      %v359 = vmul.f32 %v293, %v354
      %v360 = vmul.f32 %v294, %v354
      %v361 = vmul.f32 %v295, %v354
      %v362 = vmul.f32 %v296, %v354
      %v363 = vadd.f32 %v345, %v355
      %v364 = vadd.f32 %v346, %v356
      %v365 = vadd.f32 %v347, %v357
      %v366 = vadd.f32 %v348, %v358
      %v367 = vadd.f32 %v349, %v359
      %v368 = vadd.f32 %v350, %v360
      %v369 = vadd.f32 %v351, %v361
      %v370 = vadd.f32 %v352, %v362
      %s371 = sld [smem:[#allocation3 + $0x14]]
      %v372 = vstv %s371
      %v373 = vmul.f32 %v291, %v372
      %v374 = vmul.f32 %v292, %v372
      %v375 = vmul.f32 %v293, %v372
      %v376 = vmul.f32 %v294, %v372
      %v377 = vmul.f32 %v295, %v372
      %v378 = vmul.f32 %v296, %v372
      %v379 = vmul.f32 %v297, %v372
      %v380 = vmul.f32 %v298, %v372
      %v381 = vadd.f32 %v363, %v373
      %v382 = vadd.f32 %v364, %v374
      %v383 = vadd.f32 %v365, %v375
      %v384 = vadd.f32 %v366, %v376
      %v385 = vadd.f32 %v367, %v377
      %v386 = vadd.f32 %v368, %v378
      %v387 = vadd.f32 %v369, %v379
      %v388 = vadd.f32 %v370, %v380
      %v389 = vld [vmem:[%s282 + $0x1] sm:$0xff]
      %v390 = vld [vmem:[%s282 + $0x9] sm:$0xff]
      %v391 = vld [vmem:[%s282 + $0x19] sm:$0xff]
      %v392 = vld [vmem:[%s282 + $0x21] sm:$0xff]
      %v393 = vld [vmem:[%s282 + $0x31] sm:$0xff]
      %v394 = vld [vmem:[%s282 + $0x39] sm:$0xff]
      %v395 = vld [vmem:[%s282 + $0x49] sm:$0xff]
      %v396 = vld [vmem:[%s282 + $0x51] sm:$0xff]
      %v397 = vld [vmem:[%s282 + $0x61] sm:$0xff]
      %v398 = vld [vmem:[%s282 + $0x69] sm:$0xff]
      %v399 = vld [vmem:[%s282 + $0x79] sm:$0xff]
      %v400 = vld [vmem:[%s282 + $0x81] sm:$0xff]
      %v401 = vld [vmem:[%s282 + $0x91] sm:$0xff]
      %v402 = vld [vmem:[%s282 + $0x99] sm:$0xff]
      %v403 = vld [vmem:[%s282 + $0xa9] sm:$0xff]
      %v404 = vld [vmem:[%s282 + $0xb1] sm:$0xff]
      %s405 = sld [smem:[#allocation3 + $0x1]]
      %v406 = vstv %s405
      %v407 = vmul.f32 %v389, %v406
      %v408 = vmul.f32 %v390, %v406
      %v409 = vmul.f32 %v391, %v406
      %v410 = vmul.f32 %v392, %v406
      %v411 = vmul.f32 %v393, %v406
      %v412 = vmul.f32 %v394, %v406
      %v413 = vmul.f32 %v395, %v406
      %v414 = vmul.f32 %v396, %v406
      %v415 = vadd.f32 %v381, %v407
      %v416 = vadd.f32 %v382, %v408
      %v417 = vadd.f32 %v383, %v409
      %v418 = vadd.f32 %v384, %v410
      %v419 = vadd.f32 %v385, %v411
      %v420 = vadd.f32 %v386, %v412
      %v421 = vadd.f32 %v387, %v413
      %v422 = vadd.f32 %v388, %v414
      %s423 = sld [smem:[#allocation3 + $0x6]]
      %v424 = vstv %s423
      %v425 = vmul.f32 %v391, %v424
      %v426 = vmul.f32 %v392, %v424
      %v427 = vmul.f32 %v393, %v424
      %v428 = vmul.f32 %v394, %v424
      %v429 = vmul.f32 %v395, %v424
      %v430 = vmul.f32 %v396, %v424
      %v431 = vmul.f32 %v397, %v424
      %v432 = vmul.f32 %v398, %v424
      %v433 = vadd.f32 %v415, %v425
      %v434 = vadd.f32 %v416, %v426
      %v435 = vadd.f32 %v417, %v427
      %v436 = vadd.f32 %v418, %v428
      %v437 = vadd.f32 %v419, %v429
      %v438 = vadd.f32 %v420, %v430
      %v439 = vadd.f32 %v421, %v431
      %v440 = vadd.f32 %v422, %v432
      %s441 = sld [smem:[#allocation3 + $0xb]]
      %v442 = vstv %s441
      %v443 = vmul.f32 %v393, %v442
      %v444 = vmul.f32 %v394, %v442
      %v445 = vmul.f32 %v395, %v442
      %v446 = vmul.f32 %v396, %v442
      %v447 = vmul.f32 %v397, %v442
      %v448 = vmul.f32 %v398, %v442
      %v449 = vmul.f32 %v399, %v442
      %v450 = vmul.f32 %v400, %v442
      %v451 = vadd.f32 %v433, %v443
      %v452 = vadd.f32 %v434, %v444
      %v453 = vadd.f32 %v435, %v445
      %v454 = vadd.f32 %v436, %v446
      %v455 = vadd.f32 %v437, %v447
      %v456 = vadd.f32 %v438, %v448
      %v457 = vadd.f32 %v439, %v449
      %v458 = vadd.f32 %v440, %v450
      %s459 = sld [smem:[#allocation3 + $0x10]]
      %v460 = vstv %s459
      %v461 = vmul.f32 %v395, %v460
      %v462 = vmul.f32 %v396, %v460
      %v463 = vmul.f32 %v397, %v460
      %v464 = vmul.f32 %v398, %v460
      %v465 = vmul.f32 %v399, %v460
      %v466 = vmul.f32 %v400, %v460
      %v467 = vmul.f32 %v401, %v460
      %v468 = vmul.f32 %v402, %v460
      %v469 = vadd.f32 %v451, %v461
      %v470 = vadd.f32 %v452, %v462
      %v471 = vadd.f32 %v453, %v463
      %v472 = vadd.f32 %v454, %v464
      %v473 = vadd.f32 %v455, %v465
      %v474 = vadd.f32 %v456, %v466
      %v475 = vadd.f32 %v457, %v467
      %v476 = vadd.f32 %v458, %v468
      %s477 = sld [smem:[#allocation3 + $0x15]]
      %v478 = vstv %s477
      %v479 = vmul.f32 %v397, %v478
      %v480 = vmul.f32 %v398, %v478
      %v481 = vmul.f32 %v399, %v478
      %v482 = vmul.f32 %v400, %v478
      %v483 = vmul.f32 %v401, %v478
      %v484 = vmul.f32 %v402, %v478
      %v485 = vmul.f32 %v403, %v478
      %v486 = vmul.f32 %v404, %v478
      %v487 = vadd.f32 %v469, %v479
      %v488 = vadd.f32 %v470, %v480
      %v489 = vadd.f32 %v471, %v481
      %v490 = vadd.f32 %v472, %v482
      %v491 = vadd.f32 %v473, %v483
      %v492 = vadd.f32 %v474, %v484
      %v493 = vadd.f32 %v475, %v485
      %v494 = vadd.f32 %v476, %v486
      %v495 = vld [vmem:[%s282 + $0x2] sm:$0xff]
      %v496 = vld [vmem:[%s282 + $0xa] sm:$0xff]
      %v497 = vld [vmem:[%s282 + $0x1a] sm:$0xff]
      %v498 = vld [vmem:[%s282 + $0x22] sm:$0xff]
      %v499 = vld [vmem:[%s282 + $0x32] sm:$0xff]
      %v500 = vld [vmem:[%s282 + $0x3a] sm:$0xff]
      %v501 = vld [vmem:[%s282 + $0x4a] sm:$0xff]
      %v502 = vld [vmem:[%s282 + $0x52] sm:$0xff]
      %v503 = vld [vmem:[%s282 + $0x62] sm:$0xff]
      %v504 = vld [vmem:[%s282 + $0x6a] sm:$0xff]
      %v505 = vld [vmem:[%s282 + $0x7a] sm:$0xff]
      %v506 = vld [vmem:[%s282 + $0x82] sm:$0xff]
      %v507 = vld [vmem:[%s282 + $0x92] sm:$0xff]
      %v508 = vld [vmem:[%s282 + $0x9a] sm:$0xff]
      %v509 = vld [vmem:[%s282 + $0xaa] sm:$0xff]
      %v510 = vld [vmem:[%s282 + $0xb2] sm:$0xff]
      %s511 = sld [smem:[#allocation3 + $0x2]]
      %v512 = vstv %s511
      %v513 = vmul.f32 %v495, %v512
      %v514 = vmul.f32 %v496, %v512
      %v515 = vmul.f32 %v497, %v512
      %v516 = vmul.f32 %v498, %v512
      %v517 = vmul.f32 %v499, %v512
      %v518 = vmul.f32 %v500, %v512
      %v519 = vmul.f32 %v501, %v512
      %v520 = vmul.f32 %v502, %v512
      %v521 = vadd.f32 %v487, %v513
      %v522 = vadd.f32 %v488, %v514
      %v523 = vadd.f32 %v489, %v515
      %v524 = vadd.f32 %v490, %v516
      %v525 = vadd.f32 %v491, %v517
      %v526 = vadd.f32 %v492, %v518
      %v527 = vadd.f32 %v493, %v519
      %v528 = vadd.f32 %v494, %v520
      %s529 = sld [smem:[#allocation3 + $0x7]]
      %v530 = vstv %s529
      %v531 = vmul.f32 %v497, %v530
      %v532 = vmul.f32 %v498, %v530
      %v533 = vmul.f32 %v499, %v530
      %v534 = vmul.f32 %v500, %v530
      %v535 = vmul.f32 %v501, %v530
      %v536 = vmul.f32 %v502, %v530
      %v537 = vmul.f32 %v503, %v530
      %v538 = vmul.f32 %v504, %v530
      %v539 = vadd.f32 %v521, %v531
      %v540 = vadd.f32 %v522, %v532
      %v541 = vadd.f32 %v523, %v533
      %v542 = vadd.f32 %v524, %v534
      %v543 = vadd.f32 %v525, %v535
      %v544 = vadd.f32 %v526, %v536
      %v545 = vadd.f32 %v527, %v537
      %v546 = vadd.f32 %v528, %v538
      %s547 = sld [smem:[#allocation3 + $0xc]]
      %v548 = vstv %s547
      %v549 = vmul.f32 %v499, %v548
      %v550 = vmul.f32 %v500, %v548
      %v551 = vmul.f32 %v501, %v548
      %v552 = vmul.f32 %v502, %v548
      %v553 = vmul.f32 %v503, %v548
      %v554 = vmul.f32 %v504, %v548
      %v555 = vmul.f32 %v505, %v548
      %v556 = vmul.f32 %v506, %v548
      %v557 = vadd.f32 %v539, %v549
      %v558 = vadd.f32 %v540, %v550
      %v559 = vadd.f32 %v541, %v551
      %v560 = vadd.f32 %v542, %v552
      %v561 = vadd.f32 %v543, %v553
      %v562 = vadd.f32 %v544, %v554
      %v563 = vadd.f32 %v545, %v555
      %v564 = vadd.f32 %v546, %v556
      %s565 = sld [smem:[#allocation3 + $0x11]]
      %v566 = vstv %s565
      %v567 = vmul.f32 %v501, %v566
      %v568 = vmul.f32 %v502, %v566
      %v569 = vmul.f32 %v503, %v566
      %v570 = vmul.f32 %v504, %v566
      %v571 = vmul.f32 %v505, %v566
      %v572 = vmul.f32 %v506, %v566
      %v573 = vmul.f32 %v507, %v566
      %v574 = vmul.f32 %v508, %v566
      %v575 = vadd.f32 %v557, %v567
      %v576 = vadd.f32 %v558, %v568
      %v577 = vadd.f32 %v559, %v569
      %v578 = vadd.f32 %v560, %v570
      %v579 = vadd.f32 %v561, %v571
      %v580 = vadd.f32 %v562, %v572
      %v581 = vadd.f32 %v563, %v573
      %v582 = vadd.f32 %v564, %v574
      %s583 = sld [smem:[#allocation3 + $0x16]]
      %v584 = vstv %s583
      %v585 = vmul.f32 %v503, %v584
      %v586 = vmul.f32 %v504, %v584
      %v587 = vmul.f32 %v505, %v584
      %v588 = vmul.f32 %v506, %v584
      %v589 = vmul.f32 %v507, %v584
      %v590 = vmul.f32 %v508, %v584
      %v591 = vmul.f32 %v509, %v584
      %v592 = vmul.f32 %v510, %v584
      %v593 = vadd.f32 %v575, %v585
      %v594 = vadd.f32 %v576, %v586
      %v595 = vadd.f32 %v577, %v587
      %v596 = vadd.f32 %v578, %v588
      %v597 = vadd.f32 %v579, %v589
      %v598 = vadd.f32 %v580, %v590
      %v599 = vadd.f32 %v581, %v591
      %v600 = vadd.f32 %v582, %v592
      %v601 = vld [vmem:[%s282 + $0x3] sm:$0xff]
      %v602 = vld [vmem:[%s282 + $0xb] sm:$0xff]
      %v603 = vld [vmem:[%s282 + $0x1b] sm:$0xff]
      %v604 = vld [vmem:[%s282 + $0x23] sm:$0xff]
      %v605 = vld [vmem:[%s282 + $0x33] sm:$0xff]
      %v606 = vld [vmem:[%s282 + $0x3b] sm:$0xff]
      %v607 = vld [vmem:[%s282 + $0x4b] sm:$0xff]
      %v608 = vld [vmem:[%s282 + $0x53] sm:$0xff]
      %v609 = vld [vmem:[%s282 + $0x63] sm:$0xff]
      %v610 = vld [vmem:[%s282 + $0x6b] sm:$0xff]
      %v611 = vld [vmem:[%s282 + $0x7b] sm:$0xff]
      %v612 = vld [vmem:[%s282 + $0x83] sm:$0xff]
      %v613 = vld [vmem:[%s282 + $0x93] sm:$0xff]
      %v614 = vld [vmem:[%s282 + $0x9b] sm:$0xff]
      %v615 = vld [vmem:[%s282 + $0xab] sm:$0xff]
      %v616 = vld [vmem:[%s282 + $0xb3] sm:$0xff]
      %s617 = sld [smem:[#allocation3 + $0x3]]
      %v618 = vstv %s617
      %v619 = vmul.f32 %v601, %v618
      %v620 = vmul.f32 %v602, %v618
      %v621 = vmul.f32 %v603, %v618
      %v622 = vmul.f32 %v604, %v618
      %v623 = vmul.f32 %v605, %v618
      %v624 = vmul.f32 %v606, %v618
      %v625 = vmul.f32 %v607, %v618
      %v626 = vmul.f32 %v608, %v618
      %v627 = vadd.f32 %v593, %v619
      %v628 = vadd.f32 %v594, %v620
      %v629 = vadd.f32 %v595, %v621
      %v630 = vadd.f32 %v596, %v622
      %v631 = vadd.f32 %v597, %v623
      %v632 = vadd.f32 %v598, %v624
      %v633 = vadd.f32 %v599, %v625
      %v634 = vadd.f32 %v600, %v626
      %s635 = sld [smem:[#allocation3 + $0x8]]
      %v636 = vstv %s635
      %v637 = vmul.f32 %v603, %v636
      %v638 = vmul.f32 %v604, %v636
      %v639 = vmul.f32 %v605, %v636
      %v640 = vmul.f32 %v606, %v636
      %v641 = vmul.f32 %v607, %v636
      %v642 = vmul.f32 %v608, %v636
      %v643 = vmul.f32 %v609, %v636
      %v644 = vmul.f32 %v610, %v636
      %v645 = vadd.f32 %v627, %v637
      %v646 = vadd.f32 %v628, %v638
      %v647 = vadd.f32 %v629, %v639
      %v648 = vadd.f32 %v630, %v640
      %v649 = vadd.f32 %v631, %v641
      %v650 = vadd.f32 %v632, %v642
      %v651 = vadd.f32 %v633, %v643
      %v652 = vadd.f32 %v634, %v644
      %s653 = sld [smem:[#allocation3 + $0xd]]
      %v654 = vstv %s653
      %v655 = vmul.f32 %v605, %v654
      %v656 = vmul.f32 %v606, %v654
      %v657 = vmul.f32 %v607, %v654
      %v658 = vmul.f32 %v608, %v654
      %v659 = vmul.f32 %v609, %v654
      %v660 = vmul.f32 %v610, %v654
      %v661 = vmul.f32 %v611, %v654
      %v662 = vmul.f32 %v612, %v654
      %v663 = vadd.f32 %v645, %v655
      %v664 = vadd.f32 %v646, %v656
      %v665 = vadd.f32 %v647, %v657
      %v666 = vadd.f32 %v648, %v658
      %v667 = vadd.f32 %v649, %v659
      %v668 = vadd.f32 %v650, %v660
      %v669 = vadd.f32 %v651, %v661
      %v670 = vadd.f32 %v652, %v662
      %s671 = sld [smem:[#allocation3 + $0x12]]
      %v672 = vstv %s671
      %v673 = vmul.f32 %v607, %v672
      %v674 = vmul.f32 %v608, %v672
      %v675 = vmul.f32 %v609, %v672
      %v676 = vmul.f32 %v610, %v672
      %v677 = vmul.f32 %v611, %v672
      %v678 = vmul.f32 %v612, %v672
      %v679 = vmul.f32 %v613, %v672
      %v680 = vmul.f32 %v614, %v672
      %v681 = vadd.f32 %v663, %v673
      %v682 = vadd.f32 %v664, %v674
      %v683 = vadd.f32 %v665, %v675
      %v684 = vadd.f32 %v666, %v676
      %v685 = vadd.f32 %v667, %v677
      %v686 = vadd.f32 %v668, %v678
      %v687 = vadd.f32 %v669, %v679
      %v688 = vadd.f32 %v670, %v680
      %s689 = sld [smem:[#allocation3 + $0x17]]
      %v690 = vstv %s689
      %v691 = vmul.f32 %v609, %v690
      %v692 = vmul.f32 %v610, %v690
      %v693 = vmul.f32 %v611, %v690
      %v694 = vmul.f32 %v612, %v690
      %v695 = vmul.f32 %v613, %v690
      %v696 = vmul.f32 %v614, %v690
      %v697 = vmul.f32 %v615, %v690
      %v698 = vmul.f32 %v616, %v690
      %v699 = vadd.f32 %v681, %v691
      %v700 = vadd.f32 %v682, %v692
      %v701 = vadd.f32 %v683, %v693
      %v702 = vadd.f32 %v684, %v694
      %v703 = vadd.f32 %v685, %v695
      %v704 = vadd.f32 %v686, %v696
      %v705 = vadd.f32 %v687, %v697
      %v706 = vadd.f32 %v688, %v698
      %v707 = vld [vmem:[%s282 + $0x4] sm:$0xff]
      %v708 = vld [vmem:[%s282 + $0xc] sm:$0xff]
      %v709 = vld [vmem:[%s282 + $0x1c] sm:$0xff]
      %v710 = vld [vmem:[%s282 + $0x24] sm:$0xff]
      %v711 = vld [vmem:[%s282 + $0x34] sm:$0xff]
      %v712 = vld [vmem:[%s282 + $0x3c] sm:$0xff]
      %v713 = vld [vmem:[%s282 + $0x4c] sm:$0xff]
      %v714 = vld [vmem:[%s282 + $0x54] sm:$0xff]
      %v715 = vld [vmem:[%s282 + $0x64] sm:$0xff]
      %v716 = vld [vmem:[%s282 + $0x6c] sm:$0xff]
      %v717 = vld [vmem:[%s282 + $0x7c] sm:$0xff]
      %v718 = vld [vmem:[%s282 + $0x84] sm:$0xff]
      %v719 = vld [vmem:[%s282 + $0x94] sm:$0xff]
      %v720 = vld [vmem:[%s282 + $0x9c] sm:$0xff]
      %v721 = vld [vmem:[%s282 + $0xac] sm:$0xff]
      %v722 = vld [vmem:[%s282 + $0xb4] sm:$0xff]
      %s723 = sld [smem:[#allocation3 + $0x4]]
      %v724 = vstv %s723
      %v725 = vmul.f32 %v707, %v724
      %v726 = vmul.f32 %v708, %v724
      %v727 = vmul.f32 %v709, %v724
      %v728 = vmul.f32 %v710, %v724
      %v729 = vmul.f32 %v711, %v724
      %v730 = vmul.f32 %v712, %v724
      %v731 = vmul.f32 %v713, %v724
      %v732 = vmul.f32 %v714, %v724
      %v733 = vadd.f32 %v699, %v725
      %v734 = vadd.f32 %v700, %v726
      %v735 = vadd.f32 %v701, %v727
      %v736 = vadd.f32 %v702, %v728
      %v737 = vadd.f32 %v703, %v729
      %v738 = vadd.f32 %v704, %v730
      %v739 = vadd.f32 %v705, %v731
      %v740 = vadd.f32 %v706, %v732
      %s741 = sld [smem:[#allocation3 + $0x9]]
      %v742 = vstv %s741
      %v743 = vmul.f32 %v709, %v742
      %v744 = vmul.f32 %v710, %v742
      %v745 = vmul.f32 %v711, %v742
      %v746 = vmul.f32 %v712, %v742
      %v747 = vmul.f32 %v713, %v742
      %v748 = vmul.f32 %v714, %v742
      %v749 = vmul.f32 %v715, %v742
      %v750 = vmul.f32 %v716, %v742
      %v751 = vadd.f32 %v733, %v743
      %v752 = vadd.f32 %v734, %v744
      %v753 = vadd.f32 %v735, %v745
      %v754 = vadd.f32 %v736, %v746
      %v755 = vadd.f32 %v737, %v747
      %v756 = vadd.f32 %v738, %v748
      %v757 = vadd.f32 %v739, %v749
      %v758 = vadd.f32 %v740, %v750
      %s759 = sld [smem:[#allocation3 + $0xe]]
      %v760 = vstv %s759
      %v761 = vmul.f32 %v711, %v760
      %v762 = vmul.f32 %v712, %v760
      %v763 = vmul.f32 %v713, %v760
      %v764 = vmul.f32 %v714, %v760
      %v765 = vmul.f32 %v715, %v760
      %v766 = vmul.f32 %v716, %v760
      %v767 = vmul.f32 %v717, %v760
      %v768 = vmul.f32 %v718, %v760
      %v769 = vadd.f32 %v751, %v761
      %v770 = vadd.f32 %v752, %v762
      %v771 = vadd.f32 %v753, %v763
      %v772 = vadd.f32 %v754, %v764
      %v773 = vadd.f32 %v755, %v765
      %v774 = vadd.f32 %v756, %v766
      %v775 = vadd.f32 %v757, %v767
      %v776 = vadd.f32 %v758, %v768
      %s777 = sld [smem:[#allocation3 + $0x13]]
      %v778 = vstv %s777
      %v779 = vmul.f32 %v713, %v778
      %v780 = vmul.f32 %v714, %v778
      %v781 = vmul.f32 %v715, %v778
      %v782 = vmul.f32 %v716, %v778
      %v783 = vmul.f32 %v717, %v778
      %v784 = vmul.f32 %v718, %v778
      %v785 = vmul.f32 %v719, %v778
      %v786 = vmul.f32 %v720, %v778
      %v787 = vadd.f32 %v769, %v779
      %v788 = vadd.f32 %v770, %v780
      %v789 = vadd.f32 %v771, %v781
      %v790 = vadd.f32 %v772, %v782
      %v791 = vadd.f32 %v773, %v783
      %v792 = vadd.f32 %v774, %v784
      %v793 = vadd.f32 %v775, %v785
      %v794 = vadd.f32 %v776, %v786
      %s795 = sld [smem:[#allocation3 + $0x18]]
      %v796 = vstv %s795
      %v797 = vmul.f32 %v715, %v796
      %v798 = vmul.f32 %v716, %v796
      %v799 = vmul.f32 %v717, %v796
      %v800 = vmul.f32 %v718, %v796
      %v801 = vmul.f32 %v719, %v796
      %v802 = vmul.f32 %v720, %v796
      %v803 = vmul.f32 %v721, %v796
      %v804 = vmul.f32 %v722, %v796
      %v805 = vadd.f32 %v787, %v797
      %v806 = vadd.f32 %v788, %v798
      %v807 = vadd.f32 %v789, %v799
      %v808 = vadd.f32 %v790, %v800
      %v809 = vadd.f32 %v791, %v801
      %v810 = vadd.f32 %v792, %v802
      %v811 = vadd.f32 %v793, %v803
      %v812 = vadd.f32 %v794, %v804
      %s813 = smul.u32 %s280, 16
      %s814 = scalar_lea.vmem %s2, %s813
      %815 = vst.msk [vmem:[%s814] sm:$0xff] %vm57, %v805
      %816 = vst.msk [vmem:[%s814 + $0x8] sm:$0xff] %vm57, %v806
      %817 = vst.msk [vmem:[%s814 + $0x10] sm:$0xff] %vm57, %v807
      %818 = vst.msk [vmem:[%s814 + $0x18] sm:$0xff] %vm57, %v808
      %819 = vst.msk [vmem:[%s814 + $0x20] sm:$0xff] %vm57, %v809
      %820 = vst.msk [vmem:[%s814 + $0x28] sm:$0xff] %vm57, %v810
      %821 = vst.msk [vmem:[%s814 + $0x30] sm:$0xff] %vm57, %v811
      %822 = vst.msk [vmem:[%s814 + $0x38] sm:$0xff] %vm57, %v812
    $region18: #{tpu_custom_call.1} parent=1 // loop_footer
      %s279 = sadd.s32 1, %s275
    $region19: #{tpu_custom_call.1} parent=1 // loop_footer_branch
      %274 = sbr.rel target = $region15
    $region20: #{tpu_custom_call.1} parent=1 // loop_exit
      _
    // Predicated region
    $region21: #{tpu_custom_call.1} parent=1 // pred_check
      _
    $region22: #{tpu_custom_call.1} parent=1 // pred_check_branch
      %824 = sbr.rel (0) target = $region24
    $region23: #{tpu_custom_call.1} parent=1 // pred_region
      _
    $region24: #{tpu_custom_call.1} parent=1 // pred_fallthru
      _
    // Predicated region
    $region25: #{tpu_custom_call.1} parent=1 // pred_check
      _
    $region26: #{tpu_custom_call.1} parent=1 // pred_check_branch
      %826 = sbr.rel (0) target = $region28
    $region27: #{tpu_custom_call.1} parent=1 // pred_region
      _
    $region28: #{tpu_custom_call.1} parent=1 // pred_fallthru
      _
    %827 = vsyncpa [#allocation4], 1

</llo_original>
